<compile_context>
chip_gen: v7x
topology: tpu7x:2x2x1
jax: 0.10.0
libtpu: 0.0.40
codegen_flags: <defaults>
</compile_context>

<pallas_src>
import math

import jax
import jax.numpy as jnp
import numpy as np
from jax.experimental import pallas as pl
from jax.experimental.pallas import tpu as pltpu

_LANE = 128
_VMEM_BUDGET = 24 << 20         # resident working-set target (headroom on v7x 64 MiB)
_VMEM_LIMIT = 48 * 1024 * 1024  # explicit scoped-VMEM limit, safe on v5e/v6e/v7x


def _round_up(x, m):
    return ((x + m - 1) // m) * m


def _pick_tile_m(n_dst, n_src, out_pad, budget=_VMEM_BUDGET):
    """Destination-row tile for the aggregation kernel, sized to the VMEM budget."""
    fixed = 2 * n_src * out_pad * 2                    # double-buffered H block (bf16)
    per_row = 2 * n_src * 2 + out_pad * 4 + 2 * 4      # A (bf16, 2 bufs) + f32 out + invdeg
    tile = (budget - fixed) // max(per_row, 1)
    tile = max(16, min(512, tile))
    tile = min(tile, _round_up(n_dst, 16))
    return max(16, (tile // 16) * 16)


# ---------------------------------------------------------------------------
# Stage 1: per-relation message transform  H_r = X_src(r) @ W_r
# ---------------------------------------------------------------------------
def _rel_transform_kernel(src_idx_ref, x_ref, w_ref, h_ref):
    del src_idx_ref  # only used by the index_maps
    h = jnp.dot(x_ref[0], w_ref[0], preferred_element_type=jnp.float32)
    h_ref[0] = h.astype(h_ref.dtype)


def rel_transform(x_all, w_stack, src_idx, tile_s):
    """x_all: (T, n_src_pad, in)  w_stack: (R, in, out_pad)  src_idx: (R,) int32."""
    T, n_src_pad, in_feat = x_all.shape
    R, _, out_pad = w_stack.shape
    return pl.pallas_call(
        _rel_transform_kernel,
        out_shape=jax.ShapeDtypeStruct((R, n_src_pad, out_pad), jnp.bfloat16),
        grid_spec=pltpu.PrefetchScalarGridSpec(
            num_scalar_prefetch=1,
            grid=(R, n_src_pad // tile_s),
            in_specs=[
                # shared source features: relation -> src node type via scalar prefetch
                pl.BlockSpec((1, tile_s, in_feat), lambda r, s, sidx: (sidx[r], s, 0)),
                pl.BlockSpec((1, in_feat, out_pad), lambda r, s, sidx: (r, 0, 0)),
            ],
            out_specs=pl.BlockSpec((1, tile_s, out_pad), lambda r, s, sidx: (r, s, 0)),
        ),
        compiler_params=pltpu.CompilerParams(
            dimension_semantics=("parallel", "parallel"),
            vmem_limit_bytes=_VMEM_LIMIT),
    )(src_idx, x_all, w_stack)


# ---------------------------------------------------------------------------
# Stage 2: cross-relation mean aggregation + sum reduce + bias
#   out[i] = sum_r (1/deg_r) * (A_r @ H_r) + bias
# ---------------------------------------------------------------------------
def _rel_agg_kernel(rel_ids_ref, h_ref, a_ref, invdeg_ref, b_ref, o_ref):
    del rel_ids_ref  # only used by the index_maps
    r = pl.program_id(1)

    @pl.when(r == 0)
    def _():
        o_ref[...] = jnp.zeros_like(o_ref)

    # raw {0,1} adjacency (bf16) @ transformed messages (bf16), f32 accumulate
    msg = jnp.dot(a_ref[0], h_ref[0], preferred_element_type=jnp.float32)
    # fused per-relation 'mean' reducer: diag(1/deg) applied as a VPU multiply
    o_ref[...] += msg * invdeg_ref[0]

    @pl.when(r == pl.num_programs(1) - 1)
    def _():
        # bias add fused at the final relation step; activation=None, dropout=0
        o_ref[...] += b_ref[...]


def rel_agg(rel_ids, h_all, a_stack, invdeg, bias_row, tile_m):
    """rel_ids: (Rg,) int32 indices into h_all's relation axis
       h_all:   (R, n_src_pad, out_pad) bf16
       a_stack: (Rg, n_dst_pad, n_src_pad) bf16 raw {0,1} adjacency
       invdeg:  (Rg, n_dst_pad, 1) f32
       bias_row:(1, out_pad) f32."""
    _, n_src_pad, out_pad = h_all.shape
    Rg, n_dst_pad, _ = a_stack.shape
    return pl.pallas_call(
        _rel_agg_kernel,
        out_shape=jax.ShapeDtypeStruct((n_dst_pad, out_pad), jnp.float32),
        grid_spec=pltpu.PrefetchScalarGridSpec(
            num_scalar_prefetch=1,
            grid=(n_dst_pad // tile_m, Rg),
            in_specs=[
                pl.BlockSpec((1, n_src_pad, out_pad), lambda i, r, rid: (rid[r], 0, 0)),
                pl.BlockSpec((1, tile_m, n_src_pad), lambda i, r, rid: (r, i, 0)),
                pl.BlockSpec((1, tile_m, 1), lambda i, r, rid: (r, i, 0)),
                pl.BlockSpec((1, out_pad), lambda i, r, rid: (0, 0)),
            ],
            # same block across r -> VMEM-resident accumulator (no extra scratch)
            out_specs=pl.BlockSpec((tile_m, out_pad), lambda i, r, rid: (i, 0)),
        ),
        compiler_params=pltpu.CompilerParams(
            dimension_semantics=("parallel", "arbitrary"),
            vmem_limit_bytes=_VMEM_LIMIT),
    )(rel_ids, h_all, a_stack, invdeg, bias_row)


# ---------------------------------------------------------------------------
# Fallback for dst node types with no incoming relation: X @ loop_weight + bias
# ---------------------------------------------------------------------------
def _linear_bias_kernel(x_ref, w_ref, b_ref, o_ref):
    h = jnp.dot(x_ref[...], w_ref[...], preferred_element_type=jnp.float32)
    o_ref[...] = (h + b_ref[...]).astype(o_ref.dtype)


def linear_bias(x, w, bias_row, tile_m):
    n_pad, in_feat = x.shape
    out_pad = w.shape[-1]
    return pl.pallas_call(
        _linear_bias_kernel,
        out_shape=jax.ShapeDtypeStruct((n_pad, out_pad), jnp.float32),
        grid_spec=pltpu.PrefetchScalarGridSpec(
            num_scalar_prefetch=0,
            grid=(n_pad // tile_m,),
            in_specs=[
                pl.BlockSpec((tile_m, in_feat), lambda i: (i, 0)),
                pl.BlockSpec((in_feat, out_pad), lambda i: (0, 0)),
                pl.BlockSpec((1, out_pad), lambda i: (0, 0)),
            ],
            out_specs=pl.BlockSpec((tile_m, out_pad), lambda i: (i, 0)),
        ),
        compiler_params=pltpu.CompilerParams(
            dimension_semantics=("parallel",),
            vmem_limit_bytes=_VMEM_LIMIT),
    )(x, w, bias_row)


# ---------------------------------------------------------------------------
# Module (parameter setup + forward orchestration; hot path in Pallas)
# ---------------------------------------------------------------------------
def _xavier_uniform(key, shape, gain):
    # PyTorch xavier_uniform_ fan computation for >=2-D tensors.
    receptive = 1
    for d in shape[2:]:
        receptive *= d
    fan_in = shape[1] * receptive
    fan_out = shape[0] * receptive
    bound = gain * math.sqrt(6.0 / (fan_in + fan_out))
    return jax.random.uniform(key, shape, jnp.float32, -bound, bound)


class RelGraphConvHetero:
    def __init__(self, in_feat, out_feat, rel_names, num_bases=None,
                 bias=True, activation=None, self_loop=False, dropout=0.0,
                 *, key):
        self.in_feat = in_feat
        self.out_feat = out_feat
        self.rel_names = rel_names
        self.num_rels = len(rel_names)
        self.num_bases = num_bases
        if self.num_bases is None or self.num_bases > self.num_rels or self.num_bases < 0:
            self.num_bases = self.num_rels
        self.bias = bias
        self.activation = activation
        self.self_loop = self_loop
        # dropout==0.0 -> identity at inference
        gain = math.sqrt(2.0)  # calculate_gain('relu')
        k1, k2, k3 = jax.random.split(key, 3)
        self.weight = _xavier_uniform(k1, (self.num_bases, in_feat, out_feat), gain)
        if self.num_bases < self.num_rels:
            self.w_comp = _xavier_uniform(k2, (self.num_rels, self.num_bases), gain)
        else:
            self.w_comp = None
        self.h_bias = jnp.zeros((out_feat,), jnp.float32)
        self.loop_weight = _xavier_uniform(k3, (in_feat, out_feat), gain)

    def basis_weight(self):
        if self.num_bases < self.num_rels:
            w = self.weight.reshape(self.num_bases, self.in_feat * self.out_feat)
            w = (self.w_comp @ w).reshape(self.num_rels, self.in_feat, self.out_feat)
        else:
            w = self.weight
        return {self.rel_names[i]: w[i] for i in range(self.num_rels)}

    def forward(self, graph, xs):
        """graph: dict with keys
             'ntypes': list of node-type names
             'canonical_etypes': list of (srctype, etype, dsttype)
             'adj': dict canonical_etype -> dense {0,1} adjacency (N_dst, N_src)
           xs: dict ntype -> (N_ntype, in_feat) features."""
        ntypes = graph['ntypes']
        cets = graph['canonical_etypes']
        ws = self.basis_weight()

        out_pad = _round_up(self.out_feat, _LANE)          # lane-dense output slab
        pad_o = out_pad - self.out_feat
        bias_row = jnp.pad(self.h_bias, (0, pad_o)).reshape(1, out_pad).astype(jnp.float32)

        # -- relation weights, padded on the output (lane) dim --------------
        w_stack = jnp.stack([ws[et] for (_, et, _) in cets])
        w_stack = jnp.pad(w_stack, ((0, 0), (0, 0), (0, pad_o))).astype(jnp.float32)

        # -- one feature copy per node type (no per-relation duplication) ---
        counts = {nt: xs[nt].shape[0] for nt in ntypes}
        n_max = max(counts.values())
        tile_s = min(512, _round_up(n_max, 16))
        n_src_pad = _round_up(n_max, tile_s)
        x_all = jnp.stack([
            jnp.pad(xs[nt].astype(jnp.float32),
                    ((0, n_src_pad - counts[nt]), (0, 0)))
            for nt in ntypes])                               # (T, n_src_pad, in_feat)
        type_idx = {nt: i for i, nt in enumerate(ntypes)}
        src_idx = jnp.asarray([type_idx[src] for (src, _, _) in cets], jnp.int32)

        # -- stage 1: H_r = X_src(r) @ W_r, stored once as bf16 -------------
        h_all = rel_transform(x_all, w_stack, src_idx, tile_s)   # (R, n_src_pad, out_pad)

        hs = {}
        for ntype in ntypes:
            rel_pos = [j for j, (_, _, dst) in enumerate(cets) if dst == ntype]
            n_dst = counts[ntype]
            if rel_pos:
                tile_m = _pick_tile_m(n_dst, n_src_pad, out_pad)
                n_dst_pad = _round_up(n_dst, tile_m)
                a_list, d_list = [], []
                for j in rel_pos:
                    a = graph['adj'][cets[j]].astype(jnp.float32)
                    a = jnp.pad(a, ((0, n_dst_pad - a.shape[0]),
                                    (0, n_src_pad - a.shape[1])))
                    # degree / normalization kept in f32; only the raw {0,1}
                    # adjacency is narrowed (exact in bf16).
                    deg = jnp.sum(a, axis=1, keepdims=True)
                    d_list.append(1.0 / jnp.maximum(deg, 1.0))
                    a_list.append(a.astype(jnp.bfloat16))
                a_stack = jnp.stack(a_list)                      # (Rg, n_dst_pad, n_src_pad)
                invdeg = jnp.stack(d_list)                       # (Rg, n_dst_pad, 1)
                rel_ids = jnp.asarray(rel_pos, jnp.int32)
                h = rel_agg(rel_ids, h_all, a_stack, invdeg, bias_row, tile_m)
            else:
                # no incoming relation -> loop_weight path (matches original module)
                tile_m = min(512, _round_up(n_dst, 16))
                n_dst_pad = _round_up(n_dst, tile_m)
                x_pad = jnp.pad(xs[ntype].astype(jnp.float32),
                                ((0, n_dst_pad - n_dst), (0, 0)))
                loop_w = jnp.pad(self.loop_weight, ((0, 0), (0, pad_o))).astype(jnp.float32)
                h = linear_bias(x_pad, loop_w, bias_row, tile_m)
            # self_loop=False, activation=None, dropout=0.0 -> nothing else to do
            # TODO(synk): self_loop/activation/dropout branches omitted (defaults off).
            hs[ntype] = h[:n_dst, :self.out_feat]
        return hs


# ---------------------------------------------------------------------------
# Pure-JAX reference (f32) for verification
# ---------------------------------------------------------------------------
def reference_forward(module, graph, xs):
    ws = module.basis_weight()
    hs = {}
    for ntype in graph['ntypes']:
        rels = [c for c in graph['canonical_etypes'] if c[2] == ntype]
        if rels:
            acc = None
            for (src, et, dst) in rels:
                a = graph['adj'][(src, et, dst)].astype(jnp.float32)
                deg = jnp.clip(jnp.sum(a, axis=1, keepdims=True), 1.0, None)
                msg = (a / deg) @ (xs[src] @ ws[et])
                acc = msg if acc is None else acc + msg
            h = acc
        else:
            h = xs[ntype] @ module.loop_weight
        hs[ntype] = h + module.h_bias
    return hs


# ---------------------------------------------------------------------------
if __name__ == "__main__":
    key = jax.random.PRNGKey(0)
    IN_FEAT = 32
    OUT_FEAT = 32

    ntypes = ["user", "item", "topic"]
    counts = {"user": 64, "item": 48, "topic": 40}   # uneven -> exercises padding
    canonical_etypes = [
        ("user", "follows", "user"),
        ("user", "likes", "item"),
        ("item", "about", "item"),
        # 'topic' has no incoming relation -> exercises loop_weight path
    ]
    rel_names = [et for (_, et, _) in canonical_etypes]

    k_feat, k_adj, k_param, k_bias = jax.random.split(key, 4)

    xs = {}
    for i, nt in enumerate(ntypes):
        xs[nt] = jax.random.normal(jax.random.fold_in(k_feat, i),
                                   (counts[nt], IN_FEAT), jnp.float32)

    adj = {}
    for i, (src, et, dst) in enumerate(canonical_etypes):
        adj[(src, et, dst)] = (jax.random.uniform(
            jax.random.fold_in(k_adj, i),
            (counts[dst], counts[src])) < 0.3).astype(jnp.float32)

    graph = {"ntypes": ntypes, "canonical_etypes": canonical_etypes, "adj": adj}

    module = RelGraphConvHetero(IN_FEAT, OUT_FEAT, rel_names,
                                num_bases=2, bias=True, activation=None,
                                self_loop=False, dropout=0.0, key=k_param)
    # non-zero bias so the fused bias path is actually exercised
    module.h_bias = 0.1 * jax.random.normal(k_bias, (OUT_FEAT,), jnp.float32)

    out = module.forward(graph, xs)
    out = {k: jax.block_until_ready(v) for k, v in out.items()}

    ref = reference_forward(module, graph, xs)
    for nt in ntypes:
        np.testing.assert_allclose(np.asarray(out[nt]), np.asarray(ref[nt]),
                                   rtol=2e-2, atol=2e-2)

    print("KERNEL_OK")
</pallas_src>

<mosaic_0001>
module attributes {stable_mosaic.version = 11 : i64} {
  func.func @_rel_transform_kernel(%arg0: i32, %arg1: i32, %arg2: memref<3xi32, #tpu.memory_space<smem>>, %arg3: memref<1x64x32xf32, #tpu.memory_space<vmem>>, %arg4: memref<1x32x128xf32, #tpu.memory_space<vmem>>, %arg5: memref<1x64x128xbf16, #tpu.memory_space<vmem>>) attributes {dimension_semantics = [#tpu.dimension_semantics<parallel>, #tpu.dimension_semantics<parallel>], iteration_bounds = array<i64: 3, 1>, scalar_prefetch = 1 : i64, scratch_operands = 0 : i64, tpu.core_type = #tpu.core_type<tc>, window_params = [{transform_indices = @transform_0, window_bounds = array<i64: 1, 64, 32>}, {transform_indices = @transform_1, window_bounds = array<i64: 1, 32, 128>}, {transform_indices = @transform_2, window_bounds = array<i64: 1, 64, 128>}]} {
    %c0 = arith.constant 0 : index
    %c0_0 = arith.constant 0 : index
    %c0_1 = arith.constant 0 : index
    %0 = vector.load %arg3[%c0, %c0_0, %c0_1] : memref<1x64x32xf32, #tpu.memory_space<vmem>>, vector<1x64x32xf32>
    %1 = vector.shape_cast %0 : vector<1x64x32xf32> to vector<64x32xf32>
    %c0_2 = arith.constant 0 : index
    %c0_3 = arith.constant 0 : index
    %c0_4 = arith.constant 0 : index
    %2 = vector.load %arg4[%c0_2, %c0_3, %c0_4] : memref<1x32x128xf32, #tpu.memory_space<vmem>>, vector<1x32x128xf32>
    %3 = vector.shape_cast %2 : vector<1x32x128xf32> to vector<32x128xf32>
    %cst = arith.constant dense<0.000000e+00> : vector<64x128xf32>
    %4 = tpu.matmul %1, %3, %cst {dimension_numbers = #tpu.dot_dimension_numbers<[1], [0], [0], [1], [0, 0, 1, 1], [], []>} : vector<64x32xf32>, vector<32x128xf32>, vector<64x128xf32> -> vector<64x128xf32>
    %5 = arith.truncf %4 : vector<64x128xf32> to vector<64x128xbf16>
    %c0_5 = arith.constant 0 : index
    %c0_6 = arith.constant 0 : index
    %c0_7 = arith.constant 0 : index
    %6 = vector.load %arg5[%c0_5, %c0_6, %c0_7] : memref<1x64x128xbf16, #tpu.memory_space<vmem>>, vector<1x64x128xbf16>
    %7 = vector.shape_cast %6 : vector<1x64x128xbf16> to vector<64x128xbf16>
    %8 = vector.shape_cast %5 : vector<64x128xbf16> to vector<1x64x128xbf16>
    tpu.vector_store %arg5[%c0_5, %c0_6, %c0_7], %8 {strides = array<i32>} : memref<1x64x128xbf16, #tpu.memory_space<vmem>>, vector<1x64x128xbf16>,
    return
  }
  func.func @transform_0(%arg0: i32, %arg1: i32, %arg2: memref<3xi32, #tpu.memory_space<smem>>) -> (i32, i32, i32) {
    %0 = arith.index_cast %arg0 : i32 to index
    %1 = memref.load %arg2[%0] : memref<3xi32, #tpu.memory_space<smem>>
    %c0_i32 = arith.constant 0 : i32
    %c0_i32_0 = arith.constant 0 : i32
    return %1, %arg1, %c0_i32 : i32, i32, i32
  }
  func.func @transform_1(%arg0: i32, %arg1: i32, %arg2: memref<3xi32, #tpu.memory_space<smem>>) -> (i32, i32, i32) {
    %c0_i32 = arith.constant 0 : i32
    %c0_i32_0 = arith.constant 0 : i32
    %c0_i32_1 = arith.constant 0 : i32
    return %arg0, %c0_i32, %c0_i32_0 : i32, i32, i32
  }
  func.func @transform_2(%arg0: i32, %arg1: i32, %arg2: memref<3xi32, #tpu.memory_space<smem>>) -> (i32, i32, i32) {
    %c0_i32 = arith.constant 0 : i32
    %c0_i32_0 = arith.constant 0 : i32
    return %arg0, %arg1, %c0_i32 : i32, i32, i32
  }
}

</mosaic_0001>

<llo_original>
// kernel: tpu_custom_call.1
$region0: #{tpu_custom_call.1}
  #allocation0 [shape = 'u32[]', space=smem, size = 0x4, offset = 0x4, fixed_abs, tag = 'smem constant byte address 0x4 - core index']
  #allocation1 [shape = 'u32[144,128]{1,0:T(1,128)}', space=vmem, size = 0x12000, scoped, tag = 'internal scratch']
  #allocation2 [shape = 's32[1]{0}', space=sflag, size = 0x4, scoped, tag = 'scoped memory for tpu_custom_call.1']
  #allocation3 [shape = 'u8[512]{0}', space=smem, size = 0x200, scoped, tag = 'prefetched SMEM operand 0']
  %s0 = inlined_call_operand.vmem [shape: s32[3], index: 0, kind: input, shape index: {}]
  %s1 = inlined_call_operand.vmem [shape: f32[3,64,32], index: 1, kind: input, shape index: {}]
  %s2 = inlined_call_operand.vmem [shape: f32[3,32,128], index: 2, kind: input, shape index: {}]
  %s3 = inlined_call_operand.hbm [shape: bf16[3,64,128], index: 3, kind: output, shape index: {}]
  %s4 = sld [smem:[#allocation0]]
  $region41: #{tpu_custom_call.1} parent=0
    _
  %s6 = ssub.s32 1, %s4
  %s7 = scalar_select 0, %s6, %s4
  %s8 = sshll.u32 %s0, 4
  %s9 = int_to_ptr.vmem [resolvable:$true] %s8
  %11 = dma.vmem_to_smem %s9, 16, [#allocation3], [#allocation2]
  %12 = dma.done [#allocation2], 16
  %13 = sfence
  $region1: #{tpu_custom_call.1} parent=0
    #allocation4 [shape = 'u8[32768]{0}', space=vmem, size = 0x8000, scoped, tag = 'output window, operand 0']
    #allocation5 [shape = 's32[2]{0}', space=sflag, size = 0x8, scoped, tag = 'scoped memory for tpu_custom_call.1']
    %14 = vsyncpa [#allocation5], 0
    %s15 = scalar_lea.sflag [#allocation5], 1
    %16 = vsyncpa %s15, 0
    loop: start=0, step=1, limit=5
    $region2: #{tpu_custom_call.1} parent=1 // loop_pre_header
      _
    $region3: #{tpu_custom_call.1} parent=1 // loop_header
      %s18 = sphi 0, %s22
      %p19 = scmp.ge.s32.totalorder %s18, 5
      %s25 = sphi 0, %s37
      %s26 = sphi 0, %s33
      %s27 = sphi 0, %s25
      %s28 = sphi 0, %s26
      %s29 = sphi 0, %s27
      %s30 = sphi 0, %s28
      %s44 = sphi 0, %s46
      %s47 = sphi 0, %s44
      %s48 = sphi 0, %s47
      %s64 = sphi 0, %s48
      %s70 = sphi 0, %s72
      %s73 = sphi 0, %s70
      %s74 = sphi 0, %s73
      %s90 = sphi 0, %s74
      %s98 = sphi 0, %s100
      %s101 = sphi 0, %s98
      %s102 = sphi 0, %s101
      %s118 = sphi 0, %s102
    $region4: #{tpu_custom_call.1} parent=1 // loop_header_branch
      %21 = sbr.rel (%p19) target = $region8
    $region5: #{tpu_custom_call.1} parent=1 // loop_body
      %s23 = ssub.s32 %s18, 1
      %s24 = ssub.s32 %s18, 2
      %s31 = sadd.s32 1, %s26
      %p32 = scmp.ge.s32.totalorder %s31, 1
      %s33 = scalar_select %p32, 0, %s31
      %s34 = sadd.s32 1, %s25
      %s35 = scalar_select %p32, %s34, %s25
      %p36 = scmp.ge.s32.totalorder %s35, 3
      %s37 = scalar_select %p36, 0, %s35
      %s38 = sld [smem:[#allocation3 + %s25]]
      %s39 = sld [smem:[#allocation3 + %s37]]
      %s40 = ssub.s32 %s38, %s39
      %s41 = ssub.s32 %s26, %s33
      %s42 = sor.u32 %s40, %s41
      %p43 = scmp.eq.s32.totalorder %s42, 0
      %s45 = sadd.s32 %s44, 1
      %s46 = scalar_select %p43, %s44, %s45
      %p49 = pneg %p43
      %p50 = scmp.eq.s32.totalorder %s18, 2
      %p51 = por %p49, %p50
      %p52 = scmp.ne.s32.totalorder %s44, %s47
      %p53 = scmp.eq.s32.totalorder %s18, 0
      %p54 = por %p52, %p53
      %p55 = scmp.ne.s32.totalorder %s44, %s47
      %p56 = scmp.eq.s32.totalorder %s23, 2
      %p57 = por %p55, %p56
      %p58 = scmp.ne.s32.totalorder %s47, %s48
      %p59 = scmp.eq.s32.totalorder %s23, 0
      %p60 = por %p58, %p59
      %p61 = scmp.ne.s32.totalorder %s47, %s48
      %p62 = scmp.eq.s32.totalorder %s24, 2
      %p63 = por %p61, %p62
      %p65 = scmp.ne.s32.totalorder %s48, %s64
      %p66 = scmp.eq.s32.totalorder %s24, 0
      %p67 = por %p65, %p66
      %s68 = ssub.s32 %s25, %s37
      %p69 = scmp.eq.s32.totalorder %s68, 0
      %s71 = sadd.s32 %s70, 1
      %s72 = scalar_select %p69, %s70, %s71
      %p75 = pneg %p69
      %p76 = scmp.eq.s32.totalorder %s18, 2
      %p77 = por %p75, %p76
      %p78 = scmp.ne.s32.totalorder %s70, %s73
      %p79 = scmp.eq.s32.totalorder %s18, 0
      %p80 = por %p78, %p79
      %p81 = scmp.ne.s32.totalorder %s70, %s73
      %p82 = scmp.eq.s32.totalorder %s23, 2
      %p83 = por %p81, %p82
      %p84 = scmp.ne.s32.totalorder %s73, %s74
      %p85 = scmp.eq.s32.totalorder %s23, 0
      %p86 = por %p84, %p85
      %p87 = scmp.ne.s32.totalorder %s73, %s74
      %p88 = scmp.eq.s32.totalorder %s24, 2
      %p89 = por %p87, %p88
      %p91 = scmp.ne.s32.totalorder %s74, %s90
      %p92 = scmp.eq.s32.totalorder %s24, 0
      %p93 = por %p91, %p92
      %s94 = ssub.s32 %s25, %s37
      %s95 = ssub.s32 %s26, %s33
      %s96 = sor.u32 %s94, %s95
      %p97 = scmp.eq.s32.totalorder %s96, 0
      %s99 = sadd.s32 %s98, 1
      %s100 = scalar_select %p97, %s98, %s99
      %p103 = pneg %p97
      %p104 = scmp.eq.s32.totalorder %s18, 2
      %p105 = por %p103, %p104
      %p106 = scmp.ne.s32.totalorder %s98, %s101
      %p107 = scmp.eq.s32.totalorder %s18, 0
      %p108 = por %p106, %p107
      %p109 = scmp.ne.s32.totalorder %s98, %s101
      %p110 = scmp.eq.s32.totalorder %s23, 2
      %p111 = por %p109, %p110
      %p112 = scmp.ne.s32.totalorder %s101, %s102
      %p113 = scmp.eq.s32.totalorder %s23, 0
      %p114 = por %p112, %p113
      %p115 = scmp.ne.s32.totalorder %s101, %s102
      %p116 = scmp.eq.s32.totalorder %s24, 2
      %p117 = por %p115, %p116
      %p119 = scmp.ne.s32.totalorder %s102, %s118
      %p120 = scmp.eq.s32.totalorder %s24, 0
      %p121 = por %p119, %p120
      %p122 = scmp.le.s32.totalorder 1, %s18
      %p123 = scmp.lt.s32.totalorder %s18, 4
      %p124 = pnand %p122, %p123
      %p125 = pneg %p124
      // Predicated region
      $region9: #{tpu_custom_call.1} parent=5 // pred_check
        _
      $region10: #{tpu_custom_call.1} parent=5 // pred_check_branch
        %127 = sbr.rel (%p124) target = $region12
      $region11: #{tpu_custom_call.1} parent=5 // pred_region
        %s128 = ssub.s32 %s18, 1
      $region12: #{tpu_custom_call.1} parent=5 // pred_fallthru
        _
      %p129 = scmp.lt.s32.totalorder %s18, 3
      // Predicated region
      $region13: #{tpu_custom_call.1} parent=5 // pred_check
        %p130 = pneg %p129
      $region14: #{tpu_custom_call.1} parent=5 // pred_check_branch
        %132 = sbr.rel (%p130) target = $region16
      $region15: #{tpu_custom_call.1} parent=5 // pred_region
        // Predicated region
        $region17: #{tpu_custom_call.1} parent=15 // pred_check
          %p133 = pneg %p54
        $region18: #{tpu_custom_call.1} parent=15 // pred_check_branch
          %135 = sbr.rel (%p133) target = $region20
        $region19: #{tpu_custom_call.1} parent=15 // pred_region
          %s136 = sld [smem:[#allocation3 + %s25]]
          %s137 = smul.u32 8, %s26
          %p138 = scmp.lt.s32.totalorder %s136, 2
          %s139 = scalar_select %p138, %s136, 2
          %p140 = scmp.lt.s32.totalorder %s137, 7
          %s141 = scalar_select %p140, %s137, 7
          %s142 = smul.addr %s139, 8
          %s143 = sadd.s32 %s141, %s142
          %s144 = smul.addr %s143, 8
          %s145 = scalar_lea.vmem %s1, %s144
          %s146 = sld [smem:[#allocation3 + %s25]]
          %s147 = smul.u32 8, %s26
        $region20: #{tpu_custom_call.1} parent=15 // pred_fallthru
          _
        // Predicated region
        $region21: #{tpu_custom_call.1} parent=15 // pred_check
          %p148 = pneg %p80
        $region22: #{tpu_custom_call.1} parent=15 // pred_check_branch
          %150 = sbr.rel (%p148) target = $region24
        $region23: #{tpu_custom_call.1} parent=15 // pred_region
          %p151 = scmp.lt.s32.totalorder %s25, 2
          %s152 = scalar_select %p151, %s25, 2
          %s153 = smul.addr %s152, 4
          %s154 = smul.addr %s153, 8
          %s155 = scalar_lea.vmem %s2, %s154
        $region24: #{tpu_custom_call.1} parent=15 // pred_fallthru
          _
      $region16: #{tpu_custom_call.1} parent=5 // pred_fallthru
        _
      %p156 = scmp.le.s32.totalorder 1, %s18
      %p157 = scmp.lt.s32.totalorder %s18, 4
      %p158 = pnand %p156, %p157
      %p159 = pneg %p158
      // Predicated region
      $region25: #{tpu_custom_call.1} parent=5 // pred_check
        _
      $region26: #{tpu_custom_call.1} parent=5 // pred_check_branch
        %161 = sbr.rel (%p158) target = $region28
      $region27: #{tpu_custom_call.1} parent=5 // pred_region
        %s162 = ssub.s32 %s18, 1
        %s163 = sld [smem:[#allocation3 + %s27]]
        %s164 = smul.u32 8, %s28
        %p165 = scmp.lt.s32.totalorder %s163, 2
        %s166 = scalar_select %p165, %s163, 2
        %p167 = scmp.lt.s32.totalorder %s164, 7
        %s168 = scalar_select %p167, %s164, 7
        %s169 = smul.addr %s166, 8
        %s170 = sadd.s32 %s168, %s169
        %s171 = smul.addr %s170, 8
        %s172 = scalar_lea.vmem %s1, %s171
        %p173 = pneg %p60
        %p174 = pneg %p57
        %p175 = scmp.lt.s32.totalorder %s27, 2
        %s176 = scalar_select %p175, %s27, 2
        %s177 = smul.addr %s176, 4
        %s178 = smul.addr %s177, 8
        %s179 = scalar_lea.vmem %s2, %s178
        %p180 = pneg %p86
        %p181 = pneg %p83
        %p182 = pneg %p114
        %p183 = pneg %p111
        %s184 = sand.u32 %s101, 1
        %s185 = scalar_lea.sflag [#allocation5], %s184
        %s186 = sand.u32 %s101, 1
        %s187 = smul.addr %s186, 32
        %s188 = scalar_lea.vmem [#allocation4], %s187
        %s189 = sld [smem:[#allocation3 + %s27]]
        %s190 = smul.u32 8, %s28
        %p191 = scmp.lt.s32.totalorder %s189, 2
        %s192 = scalar_select %p191, %s189, 2
        %p193 = scmp.lt.s32.totalorder %s190, 7
        %s194 = scalar_select %p193, %s190, 7
        %s195 = smul.addr %s192, 8
        %s196 = sadd.s32 %s194, %s195
        %s197 = smul.addr %s196, 8
        %s198 = scalar_lea.vmem %s1, %s197
        %s199 = sld [smem:[#allocation3 + %s27]]
        %s200 = smul.u32 8, %s28
        %p201 = scmp.lt.s32.totalorder %s27, 2
        %s202 = scalar_select %p201, %s27, 2
        %s203 = smul.addr %s202, 4
        %s204 = smul.addr %s203, 8
        %s205 = scalar_lea.vmem %s2, %s204
        %s206 = smul.u32 8, %s28
        %v207 = vld [vmem:[%s198] sm:$0xff]
        %v208 = vld [vmem:[%s198 + $0x8] sm:$0xff]
        %v209 = vld [vmem:[%s198 + $0x10] sm:$0xff]
        %v210 = vld [vmem:[%s198 + $0x18] sm:$0xff]
        %v211 = vld [vmem:[%s198 + $0x20] sm:$0xff]
        %v212 = vld [vmem:[%s198 + $0x28] sm:$0xff]
        %v213 = vld [vmem:[%s198 + $0x30] sm:$0xff]
        %v214 = vld [vmem:[%s198 + $0x38] sm:$0xff]
        %v215 = vld [vmem:[%s205] sm:$0xff]
        %v216 = vld [vmem:[%s205 + $0x8] sm:$0xff]
        %v217 = vld [vmem:[%s205 + $0x10] sm:$0xff]
        %v218 = vld [vmem:[%s205 + $0x18] sm:$0xff]
        %vm219 = vcmask 261120
        %v221 = vsel %vm219, %v207, 0
        %v224 = vsel %vm219, %v208, 0
        %v227 = vsel %vm219, %v209, 0
        %v230 = vsel %vm219, %v210, 0
        %v233 = vsel %vm219, %v211, 0
        %v236 = vsel %vm219, %v212, 0
        %v239 = vsel %vm219, %v213, 0
        %v242 = vsel %vm219, %v214, 0
        %244 = vmatprep.subr.mxu0 0.0
        %245 = vmatpush1.msra.mxu0 %v215
        %246 = vmatprep.subr.mxu0 0.0
        %247 = vmatpush1.msra.mxu0 %v216
        %248 = vmatprep.subr.mxu0 0.0
        %249 = vmatpush1.msra.mxu0 %v217
        %250 = vmatprep.subr.mxu0 0.0
        %251 = vmatpush1.msra.mxu0 %v218
        %252 = vmatprep.subr.mxu0 0.0
        %253 = vmatpush1.msra.mxu0 0.0
        %254 = vmatprep.subr.mxu0 0.0
        %255 = vmatpush1.msra.mxu0 0.0
        %256 = vmatprep.subr.mxu0 0.0
        %257 = vmatpush1.msra.mxu0 0.0
        %258 = vmatprep.subr.mxu0 0.0
        %259 = vmatpush1.msra.mxu0 0.0
        %260 = vmatprep.subr.mxu0 0.0
        %261 = vmatpush1.msra.mxu0 0.0
        %262 = vmatprep.subr.mxu0 0.0
        %263 = vmatpush1.msra.mxu0 0.0
        %264 = vmatprep.subr.mxu0 0.0
        %265 = vmatpush1.msra.mxu0 0.0
        %266 = vmatprep.subr.mxu0 0.0
        %267 = vmatpush1.msra.mxu0 0.0
        %268 = vmatprep.subr.mxu0 0.0
        %269 = vmatpush1.msra.mxu0 0.0
        %270 = vmatprep.subr.mxu0 0.0
        %271 = vmatpush1.msra.mxu0 0.0
        %272 = vmatprep.subr.mxu0 0.0
        %273 = vmatpush1.msra.mxu0 0.0
        %274 = vmatprep.subr.mxu0 0.0
        %275 = vmatpush1.msra.mxu0 0.0
        %276 = vmatprep.subr.mxu0 0.0
        %277 = vmatpush1.msra.mxu0 0.0
        %278 = vmatprep.subr.mxu0 0.0
        %279 = vmatpush1.msra.mxu0 0.0
        %280 = vmatprep.subr.mxu0 0.0
        %281 = vmatpush1.msra.mxu0 0.0
        %282 = vmatprep.subr.mxu0 0.0
        %283 = vmatpush1.msra.mxu0 0.0
        %284 = vmatprep.subr.mxu0 0.0
        %285 = vmatpush1.msra.mxu0 0.0
        %286 = vmatprep.subr.mxu0 0.0
        %287 = vmatpush1.msra.mxu0 0.0
        %288 = vmatprep.subr.mxu0 0.0
        %289 = vmatpush1.msra.mxu0 0.0
        %290 = vmatprep.subr.mxu0 0.0
        %291 = vmatpush1.msra.mxu0 0.0
        %292 = vmatprep.subr.mxu0 0.0
        %293 = vmatpush1.msra.mxu0 0.0
        %294 = vmatprep.subr.mxu0 0.0
        %295 = vmatpush1.msra.mxu0 0.0
        %296 = vmatprep.subr.mxu0 0.0
        %297 = vmatpush1.msra.mxu0 0.0
        %298 = vmatprep.subr.mxu0 0.0
        %299 = vmatpush1.msra.mxu0 0.0
        %300 = vmatprep.subr.mxu0 0.0
        %301 = vmatpush1.msra.mxu0 0.0
        %302 = vmatprep.subr.mxu0 0.0
        %303 = vmatpush1.msra.mxu0 0.0
        %304 = vmatprep.subr.mxu0 0.0
        %305 = vmatpush1.msra.mxu0 0.0
        %306 = vmatprep.subr.mxu0 0.0
        %307 = vmatpush1.msra.mxu0 0.0
        %308 = vmatprep.mubr.f32.mxu0 0.0
        %309 = vmatmul.mubr.f32.gmra.mrb[0].mxu0 %v221
        %v310 = vpop.f32.mrb[0].mxu0
        %v311 = vadd.f32 0.0, %v310
        %v312 = vpop.f32.mrb[0].mxu0
        %313 = vmatprep.mubr.f32.mxu0 0.0
        %314 = vmatmul.mubr.f32.gmra.mrb[0].mxu0 %v224
        %v315 = vpop.f32.mrb[0].mxu0
        %v316 = vadd.f32 0.0, %v315
        %v317 = vpop.f32.mrb[0].mxu0
        %318 = vmatprep.mubr.f32.mxu0 0.0
        %319 = vmatmul.mubr.f32.gmra.mrb[0].mxu0 %v227
        %v320 = vpop.f32.mrb[0].mxu0
        %v321 = vadd.f32 0.0, %v320
        %v322 = vpop.f32.mrb[0].mxu0
        %323 = vmatprep.mubr.f32.mxu0 0.0
        %324 = vmatmul.mubr.f32.gmra.mrb[0].mxu0 %v230
        %v325 = vpop.f32.mrb[0].mxu0
        %v326 = vadd.f32 0.0, %v325
        %v327 = vpop.f32.mrb[0].mxu0
        %328 = vmatprep.mubr.f32.mxu0 0.0
        %329 = vmatmul.mubr.f32.gmra.mrb[0].mxu0 %v233
        %v330 = vpop.f32.mrb[0].mxu0
        %v331 = vadd.f32 0.0, %v330
        %v332 = vpop.f32.mrb[0].mxu0
        %333 = vmatprep.mubr.f32.mxu0 0.0
        %334 = vmatmul.mubr.f32.gmra.mrb[0].mxu0 %v236
        %v335 = vpop.f32.mrb[0].mxu0
        %v336 = vadd.f32 0.0, %v335
        %v337 = vpop.f32.mrb[0].mxu0
        %338 = vmatprep.mubr.f32.mxu0 0.0
        %339 = vmatmul.mubr.f32.gmra.mrb[0].mxu0 %v239
        %v340 = vpop.f32.mrb[0].mxu0
        %v341 = vadd.f32 0.0, %v340
        %v342 = vpop.f32.mrb[0].mxu0
        %343 = vmatprep.mubr.f32.mxu0 0.0
        %344 = vmatmul.mubr.f32.gmra.mrb[0].mxu0 %v242
        %v345 = vpop.f32.mrb[0].mxu0
        %v346 = vadd.f32 0.0, %v345
        %v347 = vpop.f32.mrb[0].mxu0
        %348 = vdwg.mxu0
        %v349 = vpack.c.bf16 %v316, %v311
        %v350 = vpack.c.bf16 %v326, %v321
        %v351 = vpack.c.bf16 %v336, %v331
        %v352 = vpack.c.bf16 %v346, %v341
        %v357 = vunpack.c.l.b16 %v349
        %v358 = vunpack.c.h.b16 %v349
        %v359 = vunpack.c.l.b16 %v350
        %v360 = vunpack.c.h.b16 %v350
        %v361 = vunpack.c.l.b16 %v351
        %v362 = vunpack.c.h.b16 %v351
        %v363 = vunpack.c.l.b16 %v352
        %v364 = vunpack.c.h.b16 %v352
        %v365 = vpack.c.b16 %v357, %v357
        %v366 = vpack.c.b16 %v358, %v358
        %v367 = vpack.c.b16 %v359, %v359
        %v368 = vpack.c.b16 %v360, %v360
        %v369 = vpack.c.b16 %v361, %v361
        %v370 = vpack.c.b16 %v362, %v362
        %v371 = vpack.c.b16 %v363, %v363
        %v372 = vpack.c.b16 %v364, %v364
        %381 = vst [vmem:[%s188] sm:$0xf] %v365
        %382 = vst [vmem:[%s188 + $0x4] sm:$0xf] %v366
        %383 = vst [vmem:[%s188 + $0x8] sm:$0xf] %v367
        %384 = vst [vmem:[%s188 + $0xc] sm:$0xf] %v368
        %385 = vst [vmem:[%s188 + $0x10] sm:$0xf] %v369
        %386 = vst [vmem:[%s188 + $0x14] sm:$0xf] %v370
        %387 = vst [vmem:[%s188 + $0x18] sm:$0xf] %v371
        %388 = vst [vmem:[%s188 + $0x1c] sm:$0xf] %v372
        %s389 = sand.u32 %s101, 1
        %s390 = scalar_lea.sflag [#allocation5], %s389
        %s391 = sand.u32 %s101, 1
        %s392 = smul.addr %s391, 32
        %s393 = scalar_lea.vmem [#allocation4], %s392
        // Predicated region
        $region29: #{tpu_custom_call.1} parent=27 // pred_check
          %p394 = pneg %p111
        $region30: #{tpu_custom_call.1} parent=27 // pred_check_branch
          %396 = sbr.rel (%p394) target = $region32
        $region31: #{tpu_custom_call.1} parent=27 // pred_region
          %s397 = smul.u32 8, %s28
          %s399 = ssub.s32 512, 512
          %400 = vsyncadd %s390, %s399
          %s401 = smul.addr %s27, 8
          %s402 = sadd.s32 %s397, %s401
          %s403 = smul.addr %s402, 64
          %s404 = scalar_lea.hbm %s3, %s403
          %s405 = sshll.u32 %s393, 4
          %s406 = int_to_ptr.vmem [resolvable:$true] %s405
          %411 = dma.vmem_to_hbm [thread:$0]  %s406, 512, %s404, %s390, 64, 64, 4
        $region32: #{tpu_custom_call.1} parent=27 // pred_fallthru
          _
      $region28: #{tpu_custom_call.1} parent=5 // pred_fallthru
        _
      %p412 = scmp.le.s32.totalorder 2, %s18
      // Predicated region
      $region33: #{tpu_custom_call.1} parent=5 // pred_check
        %p413 = pneg %p412
      $region34: #{tpu_custom_call.1} parent=5 // pred_check_branch
        %415 = sbr.rel (%p413) target = $region36
      $region35: #{tpu_custom_call.1} parent=5 // pred_region
        %s416 = ssub.s32 %s18, 2
        // Predicated region
        $region37: #{tpu_custom_call.1} parent=35 // pred_check
          %p417 = pneg %p117
        $region38: #{tpu_custom_call.1} parent=35 // pred_check_branch
          %419 = sbr.rel (%p417) target = $region40
        $region39: #{tpu_custom_call.1} parent=35 // pred_region
          %s420 = sand.u32 %s102, 1
          %s421 = scalar_lea.sflag [#allocation5], %s420
          %s422 = sand.u32 %s102, 1
          %s423 = smul.addr %s422, 32
          %s424 = scalar_lea.vmem [#allocation4], %s423
          %425 = dma.done %s421, 512
        $region40: #{tpu_custom_call.1} parent=35 // pred_fallthru
          _
      $region36: #{tpu_custom_call.1} parent=5 // pred_fallthru
        _
    $region6: #{tpu_custom_call.1} parent=1 // loop_footer
      %s22 = sadd.s32 1, %s18
    $region7: #{tpu_custom_call.1} parent=1 // loop_footer_branch
      %17 = sbr.rel target = $region3
    $region8: #{tpu_custom_call.1} parent=1 // loop_exit
      _
    %426 = vsyncpa [#allocation5], 1
    %s427 = scalar_lea.sflag [#allocation5], 1
    %428 = vsyncpa %s427, 1

</llo_original>
